<compile_context>
chip_gen: v5e
topology: v5e:2x2
jax: 0.10.0
libtpu: 0.0.40
codegen_flags: <defaults>
</compile_context>

<pallas_src>
import functools

import jax
import jax.numpy as jnp
from jax.experimental import pallas as pl
from jax.experimental.pallas import tpu as pltpu

_LANE = 128
_NEG = -1e30   # pad-column bias: exp(-1e30 - m) underflows to exactly 0.0


def _attn_decoder_kernel(
    tok_ref,       # SMEM (1,) int32 token id (scalar prefetch; consumed by index_map)
    emb_ref,       # (1, 1, H) gathered embedding row
    hid_ref,       # (1, H)
    enc_ref,       # (L, H) encoder outputs
    wattn_e_ref,   # (H, 128) attn weights, embedded half (lane-padded w/ zeros)
    wattn_h_ref,   # (H, 128) attn weights, hidden half
    battn_ref,     # (1, 128) attn bias (pad lanes = -1e30)
    wcomb_e_ref,   # (H, H)   attn_combine, embedded half
    wcomb_a_ref,   # (H, H)   attn_combine, attn_applied half
    bcomb_ref,     # (1, H)
    wgru_ref,      # (6H, H)  rows: [W_ih_r; W_ih_z; W_ih_n; W_hh_r; W_hh_z; W_hh_n]
    br_ref,        # (1, H)   b_ih_r + b_hh_r
    bz_ref,        # (1, H)   b_ih_z + b_hh_z
    bin_ref,       # (1, H)   b_ih_n
    bhn_ref,       # (1, H)   b_hh_n
    wout_ref,      # (H, 128) output projection (lane-padded with zeros)
    bout_ref,      # (1, 128) output bias (pad lanes = -1e30)
    out_ref,       # (8, 128) packed output slab
    *,
    hidden_size: int,
    n_layers: int,
    attn_len: int,
):
    del tok_ref   # the token id is only used by the embedding BlockSpec index_map
    H = hidden_size
    emb = emb_ref[0]     # (1, H)
    hid = hid_ref[...]   # (1, H)

    # ---- attn_weights = softmax(attn(cat(emb, hid))) -------------------------
    # concat replaced by two accumulating MXU pushes on the split weight; the
    # result is a full 128-lane row (pad logits = -1e30 -> weight exactly 0).
    attn_logits = (
        jnp.dot(emb, wattn_e_ref[...], preferred_element_type=jnp.float32)
        + jnp.dot(hid, wattn_h_ref[...], preferred_element_type=jnp.float32)
        + battn_ref[...])                                         # (1, 128)
    m = jnp.max(attn_logits, axis=-1, keepdims=True)
    e = jnp.exp(attn_logits - m)
    attn_w = e * pl.reciprocal(jnp.sum(e, axis=-1, keepdims=True), approx=False)

    # ---- attn_applied = attn_weights @ encoder_outputs ------------------------
    attn_applied = jnp.dot(attn_w[:, :attn_len], enc_ref[...],
                           preferred_element_type=jnp.float32)    # (1, H)

    # ---- output = attn_combine(cat(emb, attn_applied)), split-weight form ----
    output = (
        jnp.dot(emb, wcomb_e_ref[...], preferred_element_type=jnp.float32)
        + jnp.dot(attn_applied, wcomb_a_ref[...], preferred_element_type=jnp.float32)
        + bcomb_ref[...])                                         # (1, H)

    # ---- per-gate GRU weights: sublane-aligned row slices of one stacked ref --
    w_ih_r = wgru_ref[0 * H:1 * H, :]
    w_ih_z = wgru_ref[1 * H:2 * H, :]
    w_ih_n = wgru_ref[2 * H:3 * H, :]
    w_hh_r = wgru_ref[3 * H:4 * H, :]
    w_hh_z = wgru_ref[4 * H:5 * H, :]
    w_hh_n = wgru_ref[5 * H:6 * H, :]
    br, bz, b_in, b_hn = br_ref[...], bz_ref[...], bin_ref[...], bhn_ref[...]

    # ---- n_layers x (ReLU -> GRU cell), same GRU weights reused ---------------
    h = hid
    for _ in range(n_layers):
        x = jnp.maximum(output, 0.0)
        r = jax.nn.sigmoid(
            jnp.dot(x, w_ih_r, preferred_element_type=jnp.float32)
            + jnp.dot(h, w_hh_r, preferred_element_type=jnp.float32) + br)
        z = jax.nn.sigmoid(
            jnp.dot(x, w_ih_z, preferred_element_type=jnp.float32)
            + jnp.dot(h, w_hh_z, preferred_element_type=jnp.float32) + bz)
        hn = jnp.dot(h, w_hh_n, preferred_element_type=jnp.float32) + b_hn
        n = jnp.tanh(
            jnp.dot(x, w_ih_n, preferred_element_type=jnp.float32) + b_in + r * hn)
        h = (1.0 - z) * n + z * h
        output = h

    # ---- log_softmax(out(output)) over the lane-padded 128 columns ------------
    logits = (jnp.dot(output, wout_ref[...], preferred_element_type=jnp.float32)
              + bout_ref[...])                                    # (1, 128)
    m2 = jnp.max(logits, axis=-1, keepdims=True)
    lse = jnp.log(jnp.sum(jnp.exp(logits - m2), axis=-1, keepdims=True)) + m2
    log_probs = logits - lse

    # ---- pack everything into one lane-dense slab -> single writeback DMA -----
    out_ref[...] = jnp.zeros_like(out_ref)
    out_ref[0:1, :] = log_probs       # row 0: log-softmax logits (first V lanes)
    out_ref[1:2, :] = attn_w          # row 1: attention weights (first L lanes)
    out_ref[2:3, 0:H] = h             # row 2: new hidden state  (first H lanes)


class AttnDecoderRNNPallas:
    """AttnDecoderRNN forward (eval) as one Pallas TPU kernel."""

    def __init__(self, hidden_size, output_size, n_layers, max_length, seed=0):
        self.hidden_size = hidden_size
        self.output_size = output_size
        self.n_layers = n_layers
        self.max_length = max_length
        assert output_size <= _LANE and max_length <= _LANE and hidden_size <= _LANE, (
            "packed-output layout assumes V, L, H <= 128")
        # TODO(synk): for realistic vocab sizes (V >> 128) tile w_out / logits
        # along V with a grid axis (sized for the 64 MiB v7x VMEM budget) and a
        # two-pass log-softmax.

        H, V, L = hidden_size, output_size, max_length
        key = jax.random.PRNGKey(seed)
        ks = jax.random.split(key, 12)
        scale = 0.1
        f32 = jnp.float32

        # ---- raw parameters, (in, out) layout (also used by the JAX reference)
        self.embedding = scale * jax.random.normal(ks[0], (V, H), f32)
        self.w_attn = scale * jax.random.normal(ks[1], (2 * H, L), f32)
        self.b_attn = scale * jax.random.normal(ks[2], (1, L), f32)
        self.w_comb = scale * jax.random.normal(ks[3], (2 * H, H), f32)
        self.b_comb = scale * jax.random.normal(ks[4], (1, H), f32)
        self.w_ih = scale * jax.random.normal(ks[5], (H, 3 * H), f32)
        self.b_ih = scale * jax.random.normal(ks[6], (1, 3 * H), f32)
        self.w_hh = scale * jax.random.normal(ks[7], (H, 3 * H), f32)
        self.b_hh = scale * jax.random.normal(ks[8], (1, 3 * H), f32)
        self.w_out = scale * jax.random.normal(ks[9], (H, V), f32)
        self.b_out = scale * jax.random.normal(ks[10], (1, V), f32)

        # ---- kernel-layout parameters (built once, kept resident on device) ---
        # TODO(synk): bf16 weight storage would halve HBM->VMEM bytes at real
        # sizes; kept f32 here for exact parity with the reference.
        def pad_cols(x, width, fill=0.0):
            padn = width - x.shape[1]
            if padn == 0:
                return x
            return jnp.concatenate(
                [x, jnp.full((x.shape[0], padn), fill, x.dtype)], axis=1)

        self.emb_table_k = self.embedding.reshape(V, 1, H)     # 3-D for row gather
        self.w_attn_e_k = pad_cols(self.w_attn[:H], _LANE)     # (H, 128)
        self.w_attn_h_k = pad_cols(self.w_attn[H:], _LANE)     # (H, 128)
        self.b_attn_k = pad_cols(self.b_attn, _LANE, fill=_NEG)
        self.w_comb_e_k = self.w_comb[:H]                      # (H, H)
        self.w_comb_a_k = self.w_comb[H:]                      # (H, H)
        self.b_comb_k = self.b_comb
        self.w_gru_k = jnp.concatenate(
            [self.w_ih[:, 0:H], self.w_ih[:, H:2 * H], self.w_ih[:, 2 * H:3 * H],
             self.w_hh[:, 0:H], self.w_hh[:, H:2 * H], self.w_hh[:, 2 * H:3 * H]],
            axis=0)                                            # (6H, H)
        self.b_r_k = self.b_ih[:, 0:H] + self.b_hh[:, 0:H]
        self.b_z_k = self.b_ih[:, H:2 * H] + self.b_hh[:, H:2 * H]
        self.b_in_k = self.b_ih[:, 2 * H:3 * H]
        self.b_hn_k = self.b_hh[:, 2 * H:3 * H]
        self.w_out_k = pad_cols(self.w_out, _LANE)             # (H, 128)
        self.b_out_k = pad_cols(self.b_out, _LANE, fill=_NEG)

    def init_hidden(self):
        return jnp.zeros((1, 1, self.hidden_size), jnp.float32)

    def __call__(self, input_token, hidden, encoder_output, encoder_outputs):
        # input_token: (1, 1) int32; hidden: (1, 1, H);
        # encoder_outputs: (max_length, H); encoder_output unused (as in torch).
        del encoder_output
        H, V, L = self.hidden_size, self.output_size, self.max_length
        # TODO(synk): dropout_p not applied (inference semantics).
        # TODO(synk): for autoregressive decoding, fold the timestep loop into
        # the kernel (grid axis + input_output_aliases on the hidden state) so
        # weights stay VMEM resident and dispatch is amortized across tokens.

        tok = jnp.reshape(input_token, (1,)).astype(jnp.int32)
        hid0 = hidden.reshape(1, H).astype(jnp.float32)
        enc = encoder_outputs.astype(jnp.float32)

        kernel = functools.partial(
            _attn_decoder_kernel,
            hidden_size=H, n_layers=self.n_layers, attn_len=L)

        def fixed(*block_shape):
            return pl.BlockSpec(
                block_shape, lambda i, tok: tuple(0 for _ in block_shape))

        grid_spec = pltpu.PrefetchScalarGridSpec(
            num_scalar_prefetch=1,
            grid=(1,),
            in_specs=[
                # embedding row gathered by the scalar-prefetched token id
                pl.BlockSpec((1, 1, H), lambda i, tok: (tok[0], 0, 0)),
                fixed(1, H),            # hidden
                fixed(L, H),            # encoder outputs
                fixed(H, _LANE),        # w_attn (embedded half, padded)
                fixed(H, _LANE),        # w_attn (hidden half, padded)
                fixed(1, _LANE),        # b_attn (padded, -1e30 fill)
                fixed(H, H),            # w_comb (embedded half)
                fixed(H, H),            # w_comb (attn half)
                fixed(1, H),            # b_comb
                fixed(6 * H, H),        # stacked per-gate GRU weights
                fixed(1, H),            # b_r
                fixed(1, H),            # b_z
                fixed(1, H),            # b_in
                fixed(1, H),            # b_hn
                fixed(H, _LANE),        # w_out (padded)
                fixed(1, _LANE),        # b_out (padded, -1e30 fill)
            ],
            out_specs=pl.BlockSpec((8, _LANE), lambda i, tok: (0, 0)),
        )

        slab = pl.pallas_call(
            kernel,
            out_shape=jax.ShapeDtypeStruct((8, _LANE), jnp.float32),
            grid_spec=grid_spec,
            compiler_params=pltpu.CompilerParams(
                dimension_semantics=("arbitrary",)),
        )(tok, self.emb_table_k, hid0, enc,
          self.w_attn_e_k, self.w_attn_h_k, self.b_attn_k,
          self.w_comb_e_k, self.w_comb_a_k, self.b_comb_k,
          self.w_gru_k, self.b_r_k, self.b_z_k, self.b_in_k, self.b_hn_k,
          self.w_out_k, self.b_out_k)

        log_probs = slab[0:1, :V]
        attn_w = slab[1:2, :L]
        hid_new = slab[2:3, :H].reshape(1, 1, H)
        return log_probs, hid_new, attn_w


def _reference_forward(model, input_token, hidden, encoder_outputs):
    """Pure-JAX reference matching the PyTorch forward semantics."""
    H = model.hidden_size
    idx = jnp.reshape(input_token, ()).astype(jnp.int32)
    emb = model.embedding[idx][None, :]                       # (1, H)
    hid = hidden.reshape(1, H)
    cat1 = jnp.concatenate([emb, hid], axis=1)
    attn_w = jax.nn.softmax(cat1 @ model.w_attn + model.b_attn, axis=1)
    attn_applied = attn_w @ encoder_outputs
    cat2 = jnp.concatenate([emb, attn_applied], axis=1)
    output = cat2 @ model.w_comb + model.b_comb
    h = hid
    for _ in range(model.n_layers):
        x = jnp.maximum(output, 0.0)
        gi = x @ model.w_ih + model.b_ih
        gh = h @ model.w_hh + model.b_hh
        i_r, i_z, i_n = jnp.split(gi, 3, axis=1)
        h_r, h_z, h_n = jnp.split(gh, 3, axis=1)
        r = jax.nn.sigmoid(i_r + h_r)
        z = jax.nn.sigmoid(i_z + h_z)
        n = jnp.tanh(i_n + r * h_n)
        h = (1.0 - z) * n + z * h
        output = h
    log_probs = jax.nn.log_softmax(output @ model.w_out + model.b_out, axis=1)
    return log_probs, h.reshape(1, 1, H), attn_w


if __name__ == "__main__":
    HIDDEN = 32
    OUTPUT_WORDS = 40
    N_LAYERS = 2
    MAX_LENGTH = 16

    model = AttnDecoderRNNPallas(
        hidden_size=HIDDEN, output_size=OUTPUT_WORDS,
        n_layers=N_LAYERS, max_length=MAX_LENGTH, seed=0)

    key = jax.random.PRNGKey(0)
    k1, k2 = jax.random.split(key, 2)
    input_token = jnp.array([[3]], dtype=jnp.int32)                    # (1, 1)
    hidden = 0.1 * jax.random.normal(k1, (1, 1, HIDDEN), jnp.float32)  # (1, 1, H)
    encoder_outputs = 0.1 * jax.random.normal(
        k2, (MAX_LENGTH, HIDDEN), jnp.float32)                         # (L, H)
    encoder_output = encoder_outputs[-1:]                              # unused

    output, new_hidden, attn_weights = model(
        input_token, hidden, encoder_output, encoder_outputs)
    jax.block_until_ready((output, new_hidden, attn_weights))

    assert output.shape == (1, OUTPUT_WORDS)
    assert new_hidden.shape == (1, 1, HIDDEN)
    assert attn_weights.shape == (1, MAX_LENGTH)
    # sanity: log_softmax rows exp-sum to 1; attn weights sum to 1
    assert jnp.allclose(jnp.sum(jnp.exp(output)), 1.0, atol=1e-4)
    assert jnp.allclose(jnp.sum(attn_weights), 1.0, atol=1e-4)

    # numerical parity with the pure-JAX (torch-equivalent) reference
    ref_out, ref_hid, ref_attn = _reference_forward(
        model, input_token, hidden, encoder_outputs)
    assert jnp.allclose(output, ref_out, atol=1e-4, rtol=1e-4)
    assert jnp.allclose(new_hidden, ref_hid, atol=1e-4, rtol=1e-4)
    assert jnp.allclose(attn_weights, ref_attn, atol=1e-4, rtol=1e-4)

    print("KERNEL_OK")
</pallas_src>

<mosaic_0001>
module attributes {stable_mosaic.version = 11 : i64} {
  func.func @_attn_decoder_kernel(%arg0: i32, %arg1: memref<1xi32, #tpu.memory_space<smem>>, %arg2: memref<1x1x32xf32, #tpu.memory_space<vmem>>, %arg3: memref<1x32xf32, #tpu.memory_space<vmem>>, %arg4: memref<16x32xf32, #tpu.memory_space<vmem>>, %arg5: memref<32x128xf32, #tpu.memory_space<vmem>>, %arg6: memref<32x128xf32, #tpu.memory_space<vmem>>, %arg7: memref<1x128xf32, #tpu.memory_space<vmem>>, %arg8: memref<32x32xf32, #tpu.memory_space<vmem>>, %arg9: memref<32x32xf32, #tpu.memory_space<vmem>>, %arg10: memref<1x32xf32, #tpu.memory_space<vmem>>, %arg11: memref<192x32xf32, #tpu.memory_space<vmem>>, %arg12: memref<1x32xf32, #tpu.memory_space<vmem>>, %arg13: memref<1x32xf32, #tpu.memory_space<vmem>>, %arg14: memref<1x32xf32, #tpu.memory_space<vmem>>, %arg15: memref<1x32xf32, #tpu.memory_space<vmem>>, %arg16: memref<32x128xf32, #tpu.memory_space<vmem>>, %arg17: memref<1x128xf32, #tpu.memory_space<vmem>>, %arg18: memref<8x128xf32, #tpu.memory_space<vmem>>) attributes {dimension_semantics = [#tpu.dimension_semantics<arbitrary>], iteration_bounds = array<i64: 1>, scalar_prefetch = 1 : i64, scratch_operands = 0 : i64, tpu.core_type = #tpu.core_type<tc>, window_params = [{transform_indices = @transform_0, window_bounds = array<i64: 1, 1, 32>}, {pipeline_mode = #tpu.pipeline_mode<synchronous>, transform_indices = @transform_1, window_bounds = array<i64: 1, 32>}, {pipeline_mode = #tpu.pipeline_mode<synchronous>, transform_indices = @transform_2, window_bounds = array<i64: 16, 32>}, {pipeline_mode = #tpu.pipeline_mode<synchronous>, transform_indices = @transform_3, window_bounds = array<i64: 32, 128>}, {pipeline_mode = #tpu.pipeline_mode<synchronous>, transform_indices = @transform_4, window_bounds = array<i64: 32, 128>}, {pipeline_mode = #tpu.pipeline_mode<synchronous>, transform_indices = @transform_5, window_bounds = array<i64: 1, 128>}, {pipeline_mode = #tpu.pipeline_mode<synchronous>, transform_indices = @transform_6, window_bounds = array<i64: 32, 32>}, {pipeline_mode = #tpu.pipeline_mode<synchronous>, transform_indices = @transform_7, window_bounds = array<i64: 32, 32>}, {pipeline_mode = #tpu.pipeline_mode<synchronous>, transform_indices = @transform_8, window_bounds = array<i64: 1, 32>}, {pipeline_mode = #tpu.pipeline_mode<synchronous>, transform_indices = @transform_9, window_bounds = array<i64: 192, 32>}, {pipeline_mode = #tpu.pipeline_mode<synchronous>, transform_indices = @transform_10, window_bounds = array<i64: 1, 32>}, {pipeline_mode = #tpu.pipeline_mode<synchronous>, transform_indices = @transform_11, window_bounds = array<i64: 1, 32>}, {pipeline_mode = #tpu.pipeline_mode<synchronous>, transform_indices = @transform_12, window_bounds = array<i64: 1, 32>}, {pipeline_mode = #tpu.pipeline_mode<synchronous>, transform_indices = @transform_13, window_bounds = array<i64: 1, 32>}, {pipeline_mode = #tpu.pipeline_mode<synchronous>, transform_indices = @transform_14, window_bounds = array<i64: 32, 128>}, {pipeline_mode = #tpu.pipeline_mode<synchronous>, transform_indices = @transform_15, window_bounds = array<i64: 1, 128>}, {pipeline_mode = #tpu.pipeline_mode<synchronous>, transform_indices = @transform_16, window_bounds = array<i64: 8, 128>}]} {
    %c0 = arith.constant 0 : index
    %c0_0 = arith.constant 0 : index
    %c0_1 = arith.constant 0 : index
    %0 = vector.load %arg2[%c0, %c0_0, %c0_1] : memref<1x1x32xf32, #tpu.memory_space<vmem>>, vector<1x1x32xf32>
    %1 = vector.shape_cast %0 : vector<1x1x32xf32> to vector<1x32xf32>
    %c0_2 = arith.constant 0 : index
    %c0_3 = arith.constant 0 : index
    %2 = vector.load %arg3[%c0_2, %c0_3] : memref<1x32xf32, #tpu.memory_space<vmem>>, vector<1x32xf32>
    %c0_4 = arith.constant 0 : index
    %c0_5 = arith.constant 0 : index
    %3 = vector.load %arg5[%c0_4, %c0_5] : memref<32x128xf32, #tpu.memory_space<vmem>>, vector<32x128xf32>
    %cst = arith.constant dense<0.000000e+00> : vector<1x128xf32>
    %4 = tpu.matmul %1, %3, %cst {dimension_numbers = #tpu.dot_dimension_numbers<[1], [0], [0], [1], [0, 0, 1, 1], [], []>} : vector<1x32xf32>, vector<32x128xf32>, vector<1x128xf32> -> vector<1x128xf32>
    %c0_6 = arith.constant 0 : index
    %c0_7 = arith.constant 0 : index
    %5 = vector.load %arg6[%c0_6, %c0_7] : memref<32x128xf32, #tpu.memory_space<vmem>>, vector<32x128xf32>
    %cst_8 = arith.constant dense<0.000000e+00> : vector<1x128xf32>
    %6 = tpu.matmul %2, %5, %cst_8 {dimension_numbers = #tpu.dot_dimension_numbers<[1], [0], [0], [1], [0, 0, 1, 1], [], []>} : vector<1x32xf32>, vector<32x128xf32>, vector<1x128xf32> -> vector<1x128xf32>
    %7 = arith.addf %4, %6 : vector<1x128xf32>
    %c0_9 = arith.constant 0 : index
    %c0_10 = arith.constant 0 : index
    %8 = vector.load %arg7[%c0_9, %c0_10] : memref<1x128xf32, #tpu.memory_space<vmem>>, vector<1x128xf32>
    %9 = arith.addf %7, %8 : vector<1x128xf32>
    %cst_11 = arith.constant dense<0xFF800000> : vector<1xf32>
    %10 = vector.multi_reduction <maximumf>, %9, %cst_11 [1] : vector<1x128xf32> to vector<1xf32>
    %11 = vector.shape_cast %10 : vector<1xf32> to vector<1x1xf32>
    %12 = vector.broadcast %11 : vector<1x1xf32> to vector<1x128xf32>
    %13 = arith.subf %9, %12 : vector<1x128xf32>
    %14 = math.exp %13 : vector<1x128xf32>
    %cst_12 = arith.constant dense<0.000000e+00> : vector<1xf32>
    %15 = vector.multi_reduction <add>, %14, %cst_12 [1] : vector<1x128xf32> to vector<1xf32>
    %16 = vector.shape_cast %15 : vector<1xf32> to vector<1x1xf32>
    %17 = tpu.reciprocal %16 : vector<1x1xf32> -> vector<1x1xf32>
    %18 = vector.broadcast %17 : vector<1x1xf32> to vector<1x128xf32>
    %19 = arith.mulf %14, %18 : vector<1x128xf32>
    %20 = vector.extract_strided_slice %19 {offsets = [0, 0], sizes = [1, 16], strides = [1, 1]} : vector<1x128xf32> to vector<1x16xf32>
    %c0_13 = arith.constant 0 : index
    %c0_14 = arith.constant 0 : index
    %21 = vector.load %arg4[%c0_13, %c0_14] : memref<16x32xf32, #tpu.memory_space<vmem>>, vector<16x32xf32>
    %cst_15 = arith.constant dense<0.000000e+00> : vector<1x32xf32>
    %22 = tpu.matmul %20, %21, %cst_15 {dimension_numbers = #tpu.dot_dimension_numbers<[1], [0], [0], [1], [0, 0, 1, 1], [], []>} : vector<1x16xf32>, vector<16x32xf32>, vector<1x32xf32> -> vector<1x32xf32>
    %c0_16 = arith.constant 0 : index
    %c0_17 = arith.constant 0 : index
    %23 = vector.load %arg8[%c0_16, %c0_17] : memref<32x32xf32, #tpu.memory_space<vmem>>, vector<32x32xf32>
    %cst_18 = arith.constant dense<0.000000e+00> : vector<1x32xf32>
    %24 = tpu.matmul %1, %23, %cst_18 {dimension_numbers = #tpu.dot_dimension_numbers<[1], [0], [0], [1], [0, 0, 1, 1], [], []>} : vector<1x32xf32>, vector<32x32xf32>, vector<1x32xf32> -> vector<1x32xf32>
    %c0_19 = arith.constant 0 : index
    %c0_20 = arith.constant 0 : index
    %25 = vector.load %arg9[%c0_19, %c0_20] : memref<32x32xf32, #tpu.memory_space<vmem>>, vector<32x32xf32>
    %cst_21 = arith.constant dense<0.000000e+00> : vector<1x32xf32>
    %26 = tpu.matmul %22, %25, %cst_21 {dimension_numbers = #tpu.dot_dimension_numbers<[1], [0], [0], [1], [0, 0, 1, 1], [], []>} : vector<1x32xf32>, vector<32x32xf32>, vector<1x32xf32> -> vector<1x32xf32>
    %27 = arith.addf %24, %26 : vector<1x32xf32>
    %c0_22 = arith.constant 0 : index
    %c0_23 = arith.constant 0 : index
    %28 = vector.load %arg10[%c0_22, %c0_23] : memref<1x32xf32, #tpu.memory_space<vmem>>, vector<1x32xf32>
    %29 = arith.addf %27, %28 : vector<1x32xf32>
    %c0_24 = arith.constant 0 : index
    %c0_25 = arith.constant 0 : index
    %30 = vector.load %arg11[%c0_24, %c0_25] : memref<192x32xf32, #tpu.memory_space<vmem>>, vector<32x32xf32>
    %c32 = arith.constant 32 : index
    %c0_26 = arith.constant 0 : index
    %31 = vector.load %arg11[%c32, %c0_26] : memref<192x32xf32, #tpu.memory_space<vmem>>, vector<32x32xf32>
    %c64 = arith.constant 64 : index
    %c0_27 = arith.constant 0 : index
    %32 = vector.load %arg11[%c64, %c0_27] : memref<192x32xf32, #tpu.memory_space<vmem>>, vector<32x32xf32>
    %c96 = arith.constant 96 : index
    %c0_28 = arith.constant 0 : index
    %33 = vector.load %arg11[%c96, %c0_28] : memref<192x32xf32, #tpu.memory_space<vmem>>, vector<32x32xf32>
    %c128 = arith.constant 128 : index
    %c0_29 = arith.constant 0 : index
    %34 = vector.load %arg11[%c128, %c0_29] : memref<192x32xf32, #tpu.memory_space<vmem>>, vector<32x32xf32>
    %c160 = arith.constant 160 : index
    %c0_30 = arith.constant 0 : index
    %35 = vector.load %arg11[%c160, %c0_30] : memref<192x32xf32, #tpu.memory_space<vmem>>, vector<32x32xf32>
    %c0_31 = arith.constant 0 : index
    %c0_32 = arith.constant 0 : index
    %36 = vector.load %arg12[%c0_31, %c0_32] : memref<1x32xf32, #tpu.memory_space<vmem>>, vector<1x32xf32>
    %c0_33 = arith.constant 0 : index
    %c0_34 = arith.constant 0 : index
    %37 = vector.load %arg13[%c0_33, %c0_34] : memref<1x32xf32, #tpu.memory_space<vmem>>, vector<1x32xf32>
    %c0_35 = arith.constant 0 : index
    %c0_36 = arith.constant 0 : index
    %38 = vector.load %arg14[%c0_35, %c0_36] : memref<1x32xf32, #tpu.memory_space<vmem>>, vector<1x32xf32>
    %c0_37 = arith.constant 0 : index
    %c0_38 = arith.constant 0 : index
    %39 = vector.load %arg15[%c0_37, %c0_38] : memref<1x32xf32, #tpu.memory_space<vmem>>, vector<1x32xf32>
    %cst_39 = arith.constant 0.000000e+00 : f32
    %40 = vector.broadcast %cst_39 : f32 to vector<1x32xf32>
    %41 = arith.maximumf %29, %40 : vector<1x32xf32>
    %cst_40 = arith.constant dense<0.000000e+00> : vector<1x32xf32>
    %42 = tpu.matmul %41, %30, %cst_40 {dimension_numbers = #tpu.dot_dimension_numbers<[1], [0], [0], [1], [0, 0, 1, 1], [], []>} : vector<1x32xf32>, vector<32x32xf32>, vector<1x32xf32> -> vector<1x32xf32>
    %cst_41 = arith.constant dense<0.000000e+00> : vector<1x32xf32>
    %43 = tpu.matmul %2, %33, %cst_41 {dimension_numbers = #tpu.dot_dimension_numbers<[1], [0], [0], [1], [0, 0, 1, 1], [], []>} : vector<1x32xf32>, vector<32x32xf32>, vector<1x32xf32> -> vector<1x32xf32>
    %44 = arith.addf %42, %43 : vector<1x32xf32>
    %45 = arith.addf %44, %36 : vector<1x32xf32>
    %46 = arith.negf %45 : vector<1x32xf32>
    %47 = math.exp %46 : vector<1x32xf32>
    %cst_42 = arith.constant 1.000000e+00 : f32
    %48 = vector.broadcast %cst_42 : f32 to vector<1x32xf32>
    %49 = arith.addf %48, %47 : vector<1x32xf32>
    %50 = arith.divf %48, %49 : vector<1x32xf32>
    %cst_43 = arith.constant dense<0.000000e+00> : vector<1x32xf32>
    %51 = tpu.matmul %41, %31, %cst_43 {dimension_numbers = #tpu.dot_dimension_numbers<[1], [0], [0], [1], [0, 0, 1, 1], [], []>} : vector<1x32xf32>, vector<32x32xf32>, vector<1x32xf32> -> vector<1x32xf32>
    %cst_44 = arith.constant dense<0.000000e+00> : vector<1x32xf32>
    %52 = tpu.matmul %2, %34, %cst_44 {dimension_numbers = #tpu.dot_dimension_numbers<[1], [0], [0], [1], [0, 0, 1, 1], [], []>} : vector<1x32xf32>, vector<32x32xf32>, vector<1x32xf32> -> vector<1x32xf32>
    %53 = arith.addf %51, %52 : vector<1x32xf32>
    %54 = arith.addf %53, %37 : vector<1x32xf32>
    %55 = arith.negf %54 : vector<1x32xf32>
    %56 = math.exp %55 : vector<1x32xf32>
    %cst_45 = arith.constant 1.000000e+00 : f32
    %57 = vector.broadcast %cst_45 : f32 to vector<1x32xf32>
    %58 = arith.addf %57, %56 : vector<1x32xf32>
    %59 = arith.divf %57, %58 : vector<1x32xf32>
    %cst_46 = arith.constant dense<0.000000e+00> : vector<1x32xf32>
    %60 = tpu.matmul %2, %35, %cst_46 {dimension_numbers = #tpu.dot_dimension_numbers<[1], [0], [0], [1], [0, 0, 1, 1], [], []>} : vector<1x32xf32>, vector<32x32xf32>, vector<1x32xf32> -> vector<1x32xf32>
    %61 = arith.addf %60, %39 : vector<1x32xf32>
    %cst_47 = arith.constant dense<0.000000e+00> : vector<1x32xf32>
    %62 = tpu.matmul %41, %32, %cst_47 {dimension_numbers = #tpu.dot_dimension_numbers<[1], [0], [0], [1], [0, 0, 1, 1], [], []>} : vector<1x32xf32>, vector<32x32xf32>, vector<1x32xf32> -> vector<1x32xf32>
    %63 = arith.addf %62, %38 : vector<1x32xf32>
    %64 = arith.mulf %50, %61 : vector<1x32xf32>
    %65 = arith.addf %63, %64 : vector<1x32xf32>
    %66 = math.tanh %65 : vector<1x32xf32>
    %cst_48 = arith.constant 1.000000e+00 : f32
    %67 = vector.broadcast %cst_48 : f32 to vector<1x32xf32>
    %68 = arith.subf %67, %59 : vector<1x32xf32>
    %69 = arith.mulf %68, %66 : vector<1x32xf32>
    %70 = arith.mulf %59, %2 : vector<1x32xf32>
    %71 = arith.addf %69, %70 : vector<1x32xf32>
    %cst_49 = arith.constant 0.000000e+00 : f32
    %72 = vector.broadcast %cst_49 : f32 to vector<1x32xf32>
    %73 = arith.maximumf %71, %72 : vector<1x32xf32>
    %cst_50 = arith.constant dense<0.000000e+00> : vector<1x32xf32>
    %74 = tpu.matmul %73, %30, %cst_50 {dimension_numbers = #tpu.dot_dimension_numbers<[1], [0], [0], [1], [0, 0, 1, 1], [], []>} : vector<1x32xf32>, vector<32x32xf32>, vector<1x32xf32> -> vector<1x32xf32>
    %cst_51 = arith.constant dense<0.000000e+00> : vector<1x32xf32>
    %75 = tpu.matmul %71, %33, %cst_51 {dimension_numbers = #tpu.dot_dimension_numbers<[1], [0], [0], [1], [0, 0, 1, 1], [], []>} : vector<1x32xf32>, vector<32x32xf32>, vector<1x32xf32> -> vector<1x32xf32>
    %76 = arith.addf %74, %75 : vector<1x32xf32>
    %77 = arith.addf %76, %36 : vector<1x32xf32>
    %78 = arith.negf %77 : vector<1x32xf32>
    %79 = math.exp %78 : vector<1x32xf32>
    %cst_52 = arith.constant 1.000000e+00 : f32
    %80 = vector.broadcast %cst_52 : f32 to vector<1x32xf32>
    %81 = arith.addf %80, %79 : vector<1x32xf32>
    %82 = arith.divf %80, %81 : vector<1x32xf32>
    %cst_53 = arith.constant dense<0.000000e+00> : vector<1x32xf32>
    %83 = tpu.matmul %73, %31, %cst_53 {dimension_numbers = #tpu.dot_dimension_numbers<[1], [0], [0], [1], [0, 0, 1, 1], [], []>} : vector<1x32xf32>, vector<32x32xf32>, vector<1x32xf32> -> vector<1x32xf32>
    %cst_54 = arith.constant dense<0.000000e+00> : vector<1x32xf32>
    %84 = tpu.matmul %71, %34, %cst_54 {dimension_numbers = #tpu.dot_dimension_numbers<[1], [0], [0], [1], [0, 0, 1, 1], [], []>} : vector<1x32xf32>, vector<32x32xf32>, vector<1x32xf32> -> vector<1x32xf32>
    %85 = arith.addf %83, %84 : vector<1x32xf32>
    %86 = arith.addf %85, %37 : vector<1x32xf32>
    %87 = arith.negf %86 : vector<1x32xf32>
    %88 = math.exp %87 : vector<1x32xf32>
    %cst_55 = arith.constant 1.000000e+00 : f32
    %89 = vector.broadcast %cst_55 : f32 to vector<1x32xf32>
    %90 = arith.addf %89, %88 : vector<1x32xf32>
    %91 = arith.divf %89, %90 : vector<1x32xf32>
    %cst_56 = arith.constant dense<0.000000e+00> : vector<1x32xf32>
    %92 = tpu.matmul %71, %35, %cst_56 {dimension_numbers = #tpu.dot_dimension_numbers<[1], [0], [0], [1], [0, 0, 1, 1], [], []>} : vector<1x32xf32>, vector<32x32xf32>, vector<1x32xf32> -> vector<1x32xf32>
    %93 = arith.addf %92, %39 : vector<1x32xf32>
    %cst_57 = arith.constant dense<0.000000e+00> : vector<1x32xf32>
    %94 = tpu.matmul %73, %32, %cst_57 {dimension_numbers = #tpu.dot_dimension_numbers<[1], [0], [0], [1], [0, 0, 1, 1], [], []>} : vector<1x32xf32>, vector<32x32xf32>, vector<1x32xf32> -> vector<1x32xf32>
    %95 = arith.addf %94, %38 : vector<1x32xf32>
    %96 = arith.mulf %82, %93 : vector<1x32xf32>
    %97 = arith.addf %95, %96 : vector<1x32xf32>
    %98 = math.tanh %97 : vector<1x32xf32>
    %cst_58 = arith.constant 1.000000e+00 : f32
    %99 = vector.broadcast %cst_58 : f32 to vector<1x32xf32>
    %100 = arith.subf %99, %91 : vector<1x32xf32>
    %101 = arith.mulf %100, %98 : vector<1x32xf32>
    %102 = arith.mulf %91, %71 : vector<1x32xf32>
    %103 = arith.addf %101, %102 : vector<1x32xf32>
    %c0_59 = arith.constant 0 : index
    %c0_60 = arith.constant 0 : index
    %104 = vector.load %arg16[%c0_59, %c0_60] : memref<32x128xf32, #tpu.memory_space<vmem>>, vector<32x128xf32>
    %cst_61 = arith.constant dense<0.000000e+00> : vector<1x128xf32>
    %105 = tpu.matmul %103, %104, %cst_61 {dimension_numbers = #tpu.dot_dimension_numbers<[1], [0], [0], [1], [0, 0, 1, 1], [], []>} : vector<1x32xf32>, vector<32x128xf32>, vector<1x128xf32> -> vector<1x128xf32>
    %c0_62 = arith.constant 0 : index
    %c0_63 = arith.constant 0 : index
    %106 = vector.load %arg17[%c0_62, %c0_63] : memref<1x128xf32, #tpu.memory_space<vmem>>, vector<1x128xf32>
    %107 = arith.addf %105, %106 : vector<1x128xf32>
    %cst_64 = arith.constant dense<0xFF800000> : vector<1xf32>
    %108 = vector.multi_reduction <maximumf>, %107, %cst_64 [1] : vector<1x128xf32> to vector<1xf32>
    %109 = vector.shape_cast %108 : vector<1xf32> to vector<1x1xf32>
    %110 = vector.broadcast %109 : vector<1x1xf32> to vector<1x128xf32>
    %111 = arith.subf %107, %110 : vector<1x128xf32>
    %112 = math.exp %111 : vector<1x128xf32>
    %cst_65 = arith.constant dense<0.000000e+00> : vector<1xf32>
    %113 = vector.multi_reduction <add>, %112, %cst_65 [1] : vector<1x128xf32> to vector<1xf32>
    %114 = vector.shape_cast %113 : vector<1xf32> to vector<1x1xf32>
    %115 = math.log %114 : vector<1x1xf32>
    %116 = arith.addf %115, %109 : vector<1x1xf32>
    %117 = vector.broadcast %116 : vector<1x1xf32> to vector<1x128xf32>
    %118 = arith.subf %107, %117 : vector<1x128xf32>
    %cst_66 = arith.constant 0.000000e+00 : f32
    %119 = vector.broadcast %cst_66 : f32 to vector<8x128xf32>
    %c0_67 = arith.constant 0 : index
    %c0_68 = arith.constant 0 : index
    %120 = vector.load %arg18[%c0_67, %c0_68] : memref<8x128xf32, #tpu.memory_space<vmem>>, vector<8x128xf32>
    tpu.vector_store %arg18[%c0_67, %c0_68], %119 {strides = array<i32>} : memref<8x128xf32, #tpu.memory_space<vmem>>, vector<8x128xf32>,
    %c0_69 = arith.constant 0 : index
    %c0_70 = arith.constant 0 : index
    %121 = vector.load %arg18[%c0_69, %c0_70] : memref<8x128xf32, #tpu.memory_space<vmem>>, vector<1x128xf32>
    tpu.vector_store %arg18[%c0_69, %c0_70], %118 {strides = array<i32>} : memref<8x128xf32, #tpu.memory_space<vmem>>, vector<1x128xf32>,
    %c1 = arith.constant 1 : index
    %c0_71 = arith.constant 0 : index
    %122 = vector.load %arg18[%c1, %c0_71] : memref<8x128xf32, #tpu.memory_space<vmem>>, vector<1x128xf32>
    tpu.vector_store %arg18[%c1, %c0_71], %19 {strides = array<i32>} : memref<8x128xf32, #tpu.memory_space<vmem>>, vector<1x128xf32>,
    %c2 = arith.constant 2 : index
    %c0_72 = arith.constant 0 : index
    %123 = vector.load %arg18[%c2, %c0_72] : memref<8x128xf32, #tpu.memory_space<vmem>>, vector<1x32xf32>
    tpu.vector_store %arg18[%c2, %c0_72], %103 {strides = array<i32>} : memref<8x128xf32, #tpu.memory_space<vmem>>, vector<1x32xf32>,
    return
  }
  func.func @transform_0(%arg0: i32, %arg1: memref<1xi32, #tpu.memory_space<smem>>) -> (i32, i32, i32) {
    %c0 = arith.constant 0 : index
    %0 = memref.load %arg1[%c0] : memref<1xi32, #tpu.memory_space<smem>>
    %c0_i32 = arith.constant 0 : i32
    %c0_i32_0 = arith.constant 0 : i32
    %c0_i32_1 = arith.constant 0 : i32
    return %0, %c0_i32, %c0_i32_0 : i32, i32, i32
  }
  func.func @transform_1(%arg0: i32, %arg1: memref<1xi32, #tpu.memory_space<smem>>) -> (i32, i32) {
    %c0_i32 = arith.constant 0 : i32
    %c0_i32_0 = arith.constant 0 : i32
    %c0_i32_1 = arith.constant 0 : i32
    return %c0_i32, %c0_i32_0 : i32, i32
  }
  func.func @transform_2(%arg0: i32, %arg1: memref<1xi32, #tpu.memory_space<smem>>) -> (i32, i32) {
    %c0_i32 = arith.constant 0 : i32
    %c0_i32_0 = arith.constant 0 : i32
    %c0_i32_1 = arith.constant 0 : i32
    return %c0_i32, %c0_i32_0 : i32, i32
  }
  func.func @transform_3(%arg0: i32, %arg1: memref<1xi32, #tpu.memory_space<smem>>) -> (i32, i32) {
    %c0_i32 = arith.constant 0 : i32
    %c0_i32_0 = arith.constant 0 : i32
    %c0_i32_1 = arith.constant 0 : i32
    return %c0_i32, %c0_i32_0 : i32, i32
  }
  func.func @transform_4(%arg0: i32, %arg1: memref<1xi32, #tpu.memory_space<smem>>) -> (i32, i32) {
    %c0_i32 = arith.constant 0 : i32
    %c0_i32_0 = arith.constant 0 : i32
    %c0_i32_1 = arith.constant 0 : i32
    return %c0_i32, %c0_i32_0 : i32, i32
  }
  func.func @transform_5(%arg0: i32, %arg1: memref<1xi32, #tpu.memory_space<smem>>) -> (i32, i32) {
    %c0_i32 = arith.constant 0 : i32
    %c0_i32_0 = arith.constant 0 : i32
    %c0_i32_1 = arith.constant 0 : i32
    return %c0_i32, %c0_i32_0 : i32, i32
  }
  func.func @transform_6(%arg0: i32, %arg1: memref<1xi32, #tpu.memory_space<smem>>) -> (i32, i32) {
    %c0_i32 = arith.constant 0 : i32
    %c0_i32_0 = arith.constant 0 : i32
    %c0_i32_1 = arith.constant 0 : i32
    return %c0_i32, %c0_i32_0 : i32, i32
  }
  func.func @transform_7(%arg0: i32, %arg1: memref<1xi32, #tpu.memory_space<smem>>) -> (i32, i32) {
    %c0_i32 = arith.constant 0 : i32
    %c0_i32_0 = arith.constant 0 : i32
    %c0_i32_1 = arith.constant 0 : i32
    return %c0_i32, %c0_i32_0 : i32, i32
  }
  func.func @transform_8(%arg0: i32, %arg1: memref<1xi32, #tpu.memory_space<smem>>) -> (i32, i32) {
    %c0_i32 = arith.constant 0 : i32
    %c0_i32_0 = arith.constant 0 : i32
    %c0_i32_1 = arith.constant 0 : i32
    return %c0_i32, %c0_i32_0 : i32, i32
  }
  func.func @transform_9(%arg0: i32, %arg1: memref<1xi32, #tpu.memory_space<smem>>) -> (i32, i32) {
    %c0_i32 = arith.constant 0 : i32
    %c0_i32_0 = arith.constant 0 : i32
    %c0_i32_1 = arith.constant 0 : i32
    return %c0_i32, %c0_i32_0 : i32, i32
  }
  func.func @transform_10(%arg0: i32, %arg1: memref<1xi32, #tpu.memory_space<smem>>) -> (i32, i32) {
    %c0_i32 = arith.constant 0 : i32
    %c0_i32_0 = arith.constant 0 : i32
    %c0_i32_1 = arith.constant 0 : i32
    return %c0_i32, %c0_i32_0 : i32, i32
  }
  func.func @transform_11(%arg0: i32, %arg1: memref<1xi32, #tpu.memory_space<smem>>) -> (i32, i32) {
    %c0_i32 = arith.constant 0 : i32
    %c0_i32_0 = arith.constant 0 : i32
    %c0_i32_1 = arith.constant 0 : i32
    return %c0_i32, %c0_i32_0 : i32, i32
  }
  func.func @transform_12(%arg0: i32, %arg1: memref<1xi32, #tpu.memory_space<smem>>) -> (i32, i32) {
    %c0_i32 = arith.constant 0 : i32
    %c0_i32_0 = arith.constant 0 : i32
    %c0_i32_1 = arith.constant 0 : i32
    return %c0_i32, %c0_i32_0 : i32, i32
  }
  func.func @transform_13(%arg0: i32, %arg1: memref<1xi32, #tpu.memory_space<smem>>) -> (i32, i32) {
    %c0_i32 = arith.constant 0 : i32
    %c0_i32_0 = arith.constant 0 : i32
    %c0_i32_1 = arith.constant 0 : i32
    return %c0_i32, %c0_i32_0 : i32, i32
  }
  func.func @transform_14(%arg0: i32, %arg1: memref<1xi32, #tpu.memory_space<smem>>) -> (i32, i32) {
    %c0_i32 = arith.constant 0 : i32
    %c0_i32_0 = arith.constant 0 : i32
    %c0_i32_1 = arith.constant 0 : i32
    return %c0_i32, %c0_i32_0 : i32, i32
  }
  func.func @transform_15(%arg0: i32, %arg1: memref<1xi32, #tpu.memory_space<smem>>) -> (i32, i32) {
    %c0_i32 = arith.constant 0 : i32
    %c0_i32_0 = arith.constant 0 : i32
    %c0_i32_1 = arith.constant 0 : i32
    return %c0_i32, %c0_i32_0 : i32, i32
  }
  func.func @transform_16(%arg0: i32, %arg1: memref<1xi32, #tpu.memory_space<smem>>) -> (i32, i32) {
    %c0_i32 = arith.constant 0 : i32
    %c0_i32_0 = arith.constant 0 : i32
    %c0_i32_1 = arith.constant 0 : i32
    return %c0_i32, %c0_i32_0 : i32, i32
  }
}

</mosaic_0001>

<llo_original>
// kernel: tpu_custom_call.1
$region0: #{tpu_custom_call.1}
  #allocation0 [shape = 'u32[]', space=smem, size = 0x4, offset = 0x4, fixed_abs, tag = 'smem constant byte address 0x4 - core index']
  #allocation1 [shape = 'u32[72,128]{1,0:T(1,128)}', space=vmem, size = 0x9000, scoped, tag = 'internal scratch']
  #allocation2 [shape = 's32[1]{0}', space=sflag, size = 0x4, scoped, tag = 'scoped memory for tpu_custom_call.1']
  #allocation3 [shape = 's32[1]{0:T(128)S(6)}', space=smem, size = 0x200, scoped, tag = 'prefetched SMEM operand 0']
  %s0 = inlined_call_operand.<no memory space> [shape: s32[1], index: 0, kind: input, shape index: {}]
  %s1 = inlined_call_operand.vmem [shape: f32[40,1,32], index: 1, kind: input, shape index: {}]
  %s2 = inlined_call_operand.vmem [shape: f32[1,32], index: 2, kind: input, shape index: {}]
  %s3 = inlined_call_operand.vmem [shape: f32[16,32], index: 3, kind: input, shape index: {}]
  %s4 = inlined_call_operand.vmem [shape: f32[32,128], index: 4, kind: input, shape index: {}]
  %s5 = inlined_call_operand.vmem [shape: f32[32,128], index: 5, kind: input, shape index: {}]
  %s6 = inlined_call_operand.vmem [shape: f32[1,128], index: 6, kind: input, shape index: {}]
  %s7 = inlined_call_operand.vmem [shape: f32[32,32], index: 7, kind: input, shape index: {}]
  %s8 = inlined_call_operand.vmem [shape: f32[32,32], index: 8, kind: input, shape index: {}]
  %s9 = inlined_call_operand.vmem [shape: f32[1,32], index: 9, kind: input, shape index: {}]
  %s10 = inlined_call_operand.vmem [shape: f32[192,32], index: 10, kind: input, shape index: {}]
  %s11 = inlined_call_operand.vmem [shape: f32[1,32], index: 11, kind: input, shape index: {}]
  %s12 = inlined_call_operand.vmem [shape: f32[1,32], index: 12, kind: input, shape index: {}]
  %s13 = inlined_call_operand.vmem [shape: f32[1,32], index: 13, kind: input, shape index: {}]
  %s14 = inlined_call_operand.vmem [shape: f32[1,32], index: 14, kind: input, shape index: {}]
  %s15 = inlined_call_operand.vmem [shape: f32[32,128], index: 15, kind: input, shape index: {}]
  %s16 = inlined_call_operand.vmem [shape: f32[1,128], index: 16, kind: input, shape index: {}]
  %s17 = inlined_call_operand.hbm [shape: f32[8,128], index: 17, kind: output, shape index: {}]
  %s18 = sld [smem:[#allocation0]]
  $region74: #{tpu_custom_call.1} parent=0
    _
  %s20 = ssub.s32 1, %s18
  %s21 = scalar_select 0, %s20, %s18
  %22 = sst [smem:[#allocation3]] %s0
  $region1: #{tpu_custom_call.1} parent=0
    #allocation4 [shape = 'u8[4096]{0}', space=vmem, size = 0x1000, scoped, tag = 'output window, operand 0, single buffered']
    #allocation5 [shape = 's32[1]{0}', space=sflag, size = 0x4, scoped, tag = 'scoped memory for tpu_custom_call.1']
    %23 = vsyncpa [#allocation5], 0
    // Predicated region
    $region2: #{tpu_custom_call.1} parent=1 // pred_check
      _
    $region3: #{tpu_custom_call.1} parent=1 // pred_check_branch
      %25 = sbr.rel (0) target = $region5
    $region4: #{tpu_custom_call.1} parent=1 // pred_region
      %s26 = sld [smem:[#allocation3]]
      %p27 = scmp.lt.s32.totalorder %s26, 39
      %s28 = scalar_select %p27, %s26, 39
      %s29 = scalar_lea.vmem %s1, %s28
      %s30 = sld [smem:[#allocation3]]
    $region5: #{tpu_custom_call.1} parent=1 // pred_fallthru
      _
    // Predicated region
    $region6: #{tpu_custom_call.1} parent=1 // pred_check
      _
    $region7: #{tpu_custom_call.1} parent=1 // pred_check_branch
      %32 = sbr.rel (0) target = $region9
    $region8: #{tpu_custom_call.1} parent=1 // pred_region
      _
    $region9: #{tpu_custom_call.1} parent=1 // pred_fallthru
      _
    // Predicated region
    $region10: #{tpu_custom_call.1} parent=1 // pred_check
      _
    $region11: #{tpu_custom_call.1} parent=1 // pred_check_branch
      %34 = sbr.rel (0) target = $region13
    $region12: #{tpu_custom_call.1} parent=1 // pred_region
      _
    $region13: #{tpu_custom_call.1} parent=1 // pred_fallthru
      _
    // Predicated region
    $region14: #{tpu_custom_call.1} parent=1 // pred_check
      _
    $region15: #{tpu_custom_call.1} parent=1 // pred_check_branch
      %36 = sbr.rel (0) target = $region17
    $region16: #{tpu_custom_call.1} parent=1 // pred_region
      _
    $region17: #{tpu_custom_call.1} parent=1 // pred_fallthru
      _
    // Predicated region
    $region18: #{tpu_custom_call.1} parent=1 // pred_check
      _
    $region19: #{tpu_custom_call.1} parent=1 // pred_check_branch
      %38 = sbr.rel (0) target = $region21
    $region20: #{tpu_custom_call.1} parent=1 // pred_region
      _
    $region21: #{tpu_custom_call.1} parent=1 // pred_fallthru
      _
    // Predicated region
    $region22: #{tpu_custom_call.1} parent=1 // pred_check
      _
    $region23: #{tpu_custom_call.1} parent=1 // pred_check_branch
      %40 = sbr.rel (0) target = $region25
    $region24: #{tpu_custom_call.1} parent=1 // pred_region
      _
    $region25: #{tpu_custom_call.1} parent=1 // pred_fallthru
      _
    // Predicated region
    $region26: #{tpu_custom_call.1} parent=1 // pred_check
      _
    $region27: #{tpu_custom_call.1} parent=1 // pred_check_branch
      %42 = sbr.rel (0) target = $region29
    $region28: #{tpu_custom_call.1} parent=1 // pred_region
      _
    $region29: #{tpu_custom_call.1} parent=1 // pred_fallthru
      _
    // Predicated region
    $region30: #{tpu_custom_call.1} parent=1 // pred_check
      _
    $region31: #{tpu_custom_call.1} parent=1 // pred_check_branch
      %44 = sbr.rel (0) target = $region33
    $region32: #{tpu_custom_call.1} parent=1 // pred_region
      _
    $region33: #{tpu_custom_call.1} parent=1 // pred_fallthru
      _
    // Predicated region
    $region34: #{tpu_custom_call.1} parent=1 // pred_check
      _
    $region35: #{tpu_custom_call.1} parent=1 // pred_check_branch
      %46 = sbr.rel (0) target = $region37
    $region36: #{tpu_custom_call.1} parent=1 // pred_region
      _
    $region37: #{tpu_custom_call.1} parent=1 // pred_fallthru
      _
    // Predicated region
    $region38: #{tpu_custom_call.1} parent=1 // pred_check
      _
    $region39: #{tpu_custom_call.1} parent=1 // pred_check_branch
      %48 = sbr.rel (0) target = $region41
    $region40: #{tpu_custom_call.1} parent=1 // pred_region
      _
    $region41: #{tpu_custom_call.1} parent=1 // pred_fallthru
      _
    // Predicated region
    $region42: #{tpu_custom_call.1} parent=1 // pred_check
      _
    $region43: #{tpu_custom_call.1} parent=1 // pred_check_branch
      %50 = sbr.rel (0) target = $region45
    $region44: #{tpu_custom_call.1} parent=1 // pred_region
      _
    $region45: #{tpu_custom_call.1} parent=1 // pred_fallthru
      _
    // Predicated region
    $region46: #{tpu_custom_call.1} parent=1 // pred_check
      _
    $region47: #{tpu_custom_call.1} parent=1 // pred_check_branch
      %52 = sbr.rel (0) target = $region49
    $region48: #{tpu_custom_call.1} parent=1 // pred_region
      _
    $region49: #{tpu_custom_call.1} parent=1 // pred_fallthru
      _
    // Predicated region
    $region50: #{tpu_custom_call.1} parent=1 // pred_check
      _
    $region51: #{tpu_custom_call.1} parent=1 // pred_check_branch
      %54 = sbr.rel (0) target = $region53
    $region52: #{tpu_custom_call.1} parent=1 // pred_region
      _
    $region53: #{tpu_custom_call.1} parent=1 // pred_fallthru
      _
    // Predicated region
    $region54: #{tpu_custom_call.1} parent=1 // pred_check
      _
    $region55: #{tpu_custom_call.1} parent=1 // pred_check_branch
      %56 = sbr.rel (0) target = $region57
    $region56: #{tpu_custom_call.1} parent=1 // pred_region
      _
    $region57: #{tpu_custom_call.1} parent=1 // pred_fallthru
      _
    // Predicated region
    $region58: #{tpu_custom_call.1} parent=1 // pred_check
      _
    $region59: #{tpu_custom_call.1} parent=1 // pred_check_branch
      %58 = sbr.rel (0) target = $region61
    $region60: #{tpu_custom_call.1} parent=1 // pred_region
      _
    $region61: #{tpu_custom_call.1} parent=1 // pred_fallthru
      _
    // Predicated region
    $region62: #{tpu_custom_call.1} parent=1 // pred_check
      _
    $region63: #{tpu_custom_call.1} parent=1 // pred_check_branch
      %60 = sbr.rel (0) target = $region65
    $region64: #{tpu_custom_call.1} parent=1 // pred_region
      _
    $region65: #{tpu_custom_call.1} parent=1 // pred_fallthru
      _
    %s61 = sld [smem:[#allocation3]]
    %p62 = scmp.lt.s32.totalorder %s61, 39
    %s63 = scalar_select %p62, %s61, 39
    %s64 = scalar_lea.vmem %s1, %s63
    %s65 = sld [smem:[#allocation3]]
    %p66 = scmp.lt.s32.totalorder %s65, 39
    %s67 = scalar_select %p66, %s65, 39
    %s68 = scalar_lea.vmem %s1, %s67
    %s69 = sld [smem:[#allocation3]]
    %v70 = vld [vmem:[%s68] sm:$0x1]
    %v71 = vld [vmem:[%s2] sm:$0x1]
    %v72 = vld [vmem:[%s4] sm:$0xff]
    %v73 = vld [vmem:[%s4 + $0x8] sm:$0xff]
    %v74 = vld [vmem:[%s4 + $0x10] sm:$0xff]
    %v75 = vld [vmem:[%s4 + $0x18] sm:$0xff]
    %v76 = vld [vmem:[%s5] sm:$0xff]
    %v77 = vld [vmem:[%s5 + $0x8] sm:$0xff]
    %v78 = vld [vmem:[%s5 + $0x10] sm:$0xff]
    %v79 = vld [vmem:[%s5 + $0x18] sm:$0xff]
    %vm80 = vcmask 261120
    %v82 = vsel %vm80, %v71, 0
    %84 = vmatpush.msra.mxu0 0.0
    %85 = vmatpush.msra.mxu0 0.0
    %86 = vmatpush.msra.mxu0 0.0
    %87 = vmatpush.msra.mxu0 0.0
    %88 = vmatpush.msra.mxu0 0.0
    %89 = vmatpush.msra.mxu0 0.0
    %90 = vmatpush.msra.mxu0 0.0
    %91 = vmatpush.msra.mxu0 0.0
    %92 = vmatpush.msra.mxu0 0.0
    %93 = vmatpush.msra.mxu0 0.0
    %94 = vmatpush.msra.mxu0 0.0
    %95 = vmatpush.msra.mxu0 0.0
    %96 = vmatpush.msra.mxu0 %v79
    %97 = vmatpush.msra.mxu0 %v78
    %98 = vmatpush.msra.mxu0 %v77
    %99 = vmatpush.msra.mxu0 %v76
    %100 = vmatmul.f32.gmra.mxu0 %v82
    %v101 = vpop.f32.mrf.mxu0
    %v102 = vadd.f32 0.0, %v101
    %103 = vdwg.mxu0
    %v105 = vsel %vm80, %v70, 0
    %107 = vmatpush.msra.mxu0 0.0
    %108 = vmatpush.msra.mxu0 0.0
    %109 = vmatpush.msra.mxu0 0.0
    %110 = vmatpush.msra.mxu0 0.0
    %111 = vmatpush.msra.mxu0 0.0
    %112 = vmatpush.msra.mxu0 0.0
    %113 = vmatpush.msra.mxu0 0.0
    %114 = vmatpush.msra.mxu0 0.0
    %115 = vmatpush.msra.mxu0 0.0
    %116 = vmatpush.msra.mxu0 0.0
    %117 = vmatpush.msra.mxu0 0.0
    %118 = vmatpush.msra.mxu0 0.0
    %119 = vmatpush.msra.mxu0 %v75
    %120 = vmatpush.msra.mxu0 %v74
    %121 = vmatpush.msra.mxu0 %v73
    %122 = vmatpush.msra.mxu0 %v72
    %123 = vmatmul.f32.gmra.mxu0 %v105
    %v124 = vpop.f32.mrf.mxu0
    %v125 = vadd.f32 %v102, %v124
    %126 = vdwg.mxu0
    %v127 = vld [vmem:[%s6] sm:$0x1]
    %v128 = vadd.f32 %v125, %v127
    %vm129 = vcmask 1040384
    %v130 = vsel %vm129, %v128, -inf
    %131 = vmax.xlane.f32.xlu0 %v130
    %v132 = vpop.xlane.xlu0 %131
    %v133 = vsub.f32 %v128, %v132
    %v134 = vmul.f32 %v133, 1.442695
    %v135 = vpow.pop %v134
    %v136 = vsel %vm129, %v135, 0.0
    %137 = vadd.xlane.f32.xlu0 %v136
    %v138 = vpop.xlane.xlu0 %137
    %v139 = vrcp.pop %v138
    %v140 = vmul.f32 %v138, %v139
    %v141 = vsub.f32 1.0, %v140
    %v142 = vmul.f32 %v139, %v141
    %v143 = vadd.f32 %v139, %v142
    %vm144 = vweird.f32 %v138
    %vm145 = vweird.f32 %v139
    %vm146 = vmor %vm144, %vm145
    %v147 = vsel %vm146, %v139, %v143
    %v148 = vand.u32 2147483647, %v138
    %vm149 = vcmp.eq.f32.partialorder %v148, 8.507059e+37
    %v150 = vand.u32 %v138, 2147483648
    %v151 = vor.u32 1.1754944e-38, %v150
    %v152 = vsel %vm149, %v151, %v147
    %v153 = vmul.f32 %v135, %v152
    %v154 = vld [vmem:[%s3] sm:$0xff]
    %v155 = vld [vmem:[%s3 + $0x8] sm:$0xff]
    %vm156 = vcmask 130048
    %v158 = vsel %vm156, %v153, 0
    %160 = vmatpush.msra.mxu0 0.0
    %161 = vmatpush.msra.mxu0 0.0
    %162 = vmatpush.msra.mxu0 0.0
    %163 = vmatpush.msra.mxu0 0.0
    %164 = vmatpush.msra.mxu0 0.0
    %165 = vmatpush.msra.mxu0 0.0
    %166 = vmatpush.msra.mxu0 0.0
    %167 = vmatpush.msra.mxu0 0.0
    %168 = vmatpush.msra.mxu0 0.0
    %169 = vmatpush.msra.mxu0 0.0
    %170 = vmatpush.msra.mxu0 0.0
    %171 = vmatpush.msra.mxu0 0.0
    %172 = vmatpush.msra.mxu0 0.0
    %173 = vmatpush.msra.mxu0 0.0
    %174 = vmatpush.msra.mxu0 %v155
    %175 = vmatpush.msra.mxu0 %v154
    %176 = vmatmul.f32.gmra.mxu0 %v158
    %v177 = vpop.f32.mrf.mxu0
    %v178 = vadd.f32 0.0, %v177
    %179 = vdwg.mxu0
    %v180 = vld [vmem:[%s7] sm:$0xff]
    %v181 = vld [vmem:[%s7 + $0x8] sm:$0xff]
    %v182 = vld [vmem:[%s7 + $0x10] sm:$0xff]
    %v183 = vld [vmem:[%s7 + $0x18] sm:$0xff]
    %v184 = vld [vmem:[%s8] sm:$0xff]
    %v185 = vld [vmem:[%s8 + $0x8] sm:$0xff]
    %v186 = vld [vmem:[%s8 + $0x10] sm:$0xff]
    %v187 = vld [vmem:[%s8 + $0x18] sm:$0xff]
    %v189 = vsel %vm80, %v178, 0
    %191 = vmatpush.msra.mxu0 0.0
    %192 = vmatpush.msra.mxu0 0.0
    %193 = vmatpush.msra.mxu0 0.0
    %194 = vmatpush.msra.mxu0 0.0
    %195 = vmatpush.msra.mxu0 0.0
    %196 = vmatpush.msra.mxu0 0.0
    %197 = vmatpush.msra.mxu0 0.0
    %198 = vmatpush.msra.mxu0 0.0
    %199 = vmatpush.msra.mxu0 0.0
    %200 = vmatpush.msra.mxu0 0.0
    %201 = vmatpush.msra.mxu0 0.0
    %202 = vmatpush.msra.mxu0 0.0
    %203 = vmatpush.msra.mxu0 %v187
    %204 = vmatpush.msra.mxu0 %v186
    %205 = vmatpush.msra.mxu0 %v185
    %206 = vmatpush.msra.mxu0 %v184
    %207 = vmatmul.f32.gmra.mxu0 %v189
    %v208 = vpop.f32.mrf.mxu0
    %v209 = vadd.f32 0.0, %v208
    %210 = vdwg.mxu0
    %211 = vmatpush.msra.mxu0 0.0
    %212 = vmatpush.msra.mxu0 0.0
    %213 = vmatpush.msra.mxu0 0.0
    %214 = vmatpush.msra.mxu0 0.0
    %215 = vmatpush.msra.mxu0 0.0
    %216 = vmatpush.msra.mxu0 0.0
    %217 = vmatpush.msra.mxu0 0.0
    %218 = vmatpush.msra.mxu0 0.0
    %219 = vmatpush.msra.mxu0 0.0
    %220 = vmatpush.msra.mxu0 0.0
    %221 = vmatpush.msra.mxu0 0.0
    %222 = vmatpush.msra.mxu0 0.0
    %223 = vmatpush.msra.mxu0 %v183
    %224 = vmatpush.msra.mxu0 %v182
    %225 = vmatpush.msra.mxu0 %v181
    %226 = vmatpush.msra.mxu0 %v180
    %227 = vmatmul.f32.gmra.mxu0 %v105
    %v228 = vpop.f32.mrf.mxu0
    %v229 = vadd.f32 %v209, %v228
    %230 = vdwg.mxu0
    %v231 = vld [vmem:[%s9] sm:$0x1]
    %v232 = vadd.f32 %v229, %v231
    %v233 = vld [vmem:[%s10] sm:$0xff]
    %v234 = vld [vmem:[%s10 + $0x8] sm:$0xff]
    %v235 = vld [vmem:[%s10 + $0x10] sm:$0xff]
    %v236 = vld [vmem:[%s10 + $0x18] sm:$0xff]
    %v237 = vld [vmem:[%s10 + $0x20] sm:$0xff]
    %v238 = vld [vmem:[%s10 + $0x28] sm:$0xff]
    %v239 = vld [vmem:[%s10 + $0x30] sm:$0xff]
    %v240 = vld [vmem:[%s10 + $0x38] sm:$0xff]
    %v241 = vld [vmem:[%s10 + $0x40] sm:$0xff]
    %v242 = vld [vmem:[%s10 + $0x48] sm:$0xff]
    %v243 = vld [vmem:[%s10 + $0x50] sm:$0xff]
    %v244 = vld [vmem:[%s10 + $0x58] sm:$0xff]
    %v245 = vld [vmem:[%s10 + $0x60] sm:$0xff]
    %v246 = vld [vmem:[%s10 + $0x68] sm:$0xff]
    %v247 = vld [vmem:[%s10 + $0x70] sm:$0xff]
    %v248 = vld [vmem:[%s10 + $0x78] sm:$0xff]
    %v249 = vld [vmem:[%s10 + $0x80] sm:$0xff]
    %v250 = vld [vmem:[%s10 + $0x88] sm:$0xff]
    %v251 = vld [vmem:[%s10 + $0x90] sm:$0xff]
    %v252 = vld [vmem:[%s10 + $0x98] sm:$0xff]
    %v253 = vld [vmem:[%s10 + $0xa0] sm:$0xff]
    %v254 = vld [vmem:[%s10 + $0xa8] sm:$0xff]
    %v255 = vld [vmem:[%s10 + $0xb0] sm:$0xff]
    %v256 = vld [vmem:[%s10 + $0xb8] sm:$0xff]
    %v257 = vld [vmem:[%s11] sm:$0x1]
    %v258 = vld [vmem:[%s12] sm:$0x1]
    %v259 = vld [vmem:[%s13] sm:$0x1]
    %v260 = vld [vmem:[%s14] sm:$0x1]
    %v261 = vmax.f32 %v232, 0.0
    %262 = vmatpush.msra.mxu0 0.0
    %263 = vmatpush.msra.mxu0 0.0
    %264 = vmatpush.msra.mxu0 0.0
    %265 = vmatpush.msra.mxu0 0.0
    %266 = vmatpush.msra.mxu0 0.0
    %267 = vmatpush.msra.mxu0 0.0
    %268 = vmatpush.msra.mxu0 0.0
    %269 = vmatpush.msra.mxu0 0.0
    %270 = vmatpush.msra.mxu0 0.0
    %271 = vmatpush.msra.mxu0 0.0
    %272 = vmatpush.msra.mxu0 0.0
    %273 = vmatpush.msra.mxu0 0.0
    %274 = vmatpush.msra.mxu0 %v248
    %275 = vmatpush.msra.mxu0 %v247
    %276 = vmatpush.msra.mxu0 %v246
    %277 = vmatpush.msra.mxu0 %v245
    %278 = vmatmul.f32.gmra.mxu0 %v82
    %v279 = vpop.f32.mrf.mxu0
    %v280 = vadd.f32 0.0, %v279
    %281 = vdwg.mxu0
    %v283 = vsel %vm80, %v261, 0
    %285 = vmatpush.msra.mxu0 0.0
    %286 = vmatpush.msra.mxu0 0.0
    %287 = vmatpush.msra.mxu0 0.0
    %288 = vmatpush.msra.mxu0 0.0
    %289 = vmatpush.msra.mxu0 0.0
    %290 = vmatpush.msra.mxu0 0.0
    %291 = vmatpush.msra.mxu0 0.0
    %292 = vmatpush.msra.mxu0 0.0
    %293 = vmatpush.msra.mxu0 0.0
    %294 = vmatpush.msra.mxu0 0.0
    %295 = vmatpush.msra.mxu0 0.0
    %296 = vmatpush.msra.mxu0 0.0
    %297 = vmatpush.msra.mxu0 %v236
    %298 = vmatpush.msra.mxu0 %v235
    %299 = vmatpush.msra.mxu0 %v234
    %300 = vmatpush.msra.mxu0 %v233
    %301 = vmatmul.f32.gmra.mxu0 %v283
    %v302 = vpop.f32.mrf.mxu0
    %v303 = vadd.f32 %v280, %v302
    %304 = vdwg.mxu0
    %v305 = vadd.f32 %v303, %v257
    %v306 = vxor.u32 %v305, 2147483648
    %v307 = vmul.f32 %v306, 1.442695
    %v308 = vpow.pop %v307
    %v309 = vadd.f32 %v308, 1.0
    %v310 = vrcp.pop %v309
    %v311 = vmul.f32 %v309, %v310
    %v312 = vsub.f32 1.0, %v311
    %v313 = vmul.f32 %v310, %v312
    %v314 = vadd.f32 %v310, %v313
    %vm315 = vweird.f32 %v309
    %vm316 = vweird.f32 %v310
    %vm317 = vmor %vm315, %vm316
    %v318 = vsel %vm317, %v310, %v314
    %v319 = vand.u32 2147483647, %v309
    %vm320 = vcmp.eq.f32.partialorder %v319, 8.507059e+37
    %v321 = vand.u32 %v309, 2147483648
    %v322 = vor.u32 1.1754944e-38, %v321
    %v323 = vsel %vm320, %v322, %v318
    %v324 = vmul.f32 1.0, %v323
    %325 = vmatpush.msra.mxu0 0.0
    %326 = vmatpush.msra.mxu0 0.0
    %327 = vmatpush.msra.mxu0 0.0
    %328 = vmatpush.msra.mxu0 0.0
    %329 = vmatpush.msra.mxu0 0.0
    %330 = vmatpush.msra.mxu0 0.0
    %331 = vmatpush.msra.mxu0 0.0
    %332 = vmatpush.msra.mxu0 0.0
    %333 = vmatpush.msra.mxu0 0.0
    %334 = vmatpush.msra.mxu0 0.0
    %335 = vmatpush.msra.mxu0 0.0
    %336 = vmatpush.msra.mxu0 0.0
    %337 = vmatpush.msra.mxu0 %v252
    %338 = vmatpush.msra.mxu0 %v251
    %339 = vmatpush.msra.mxu0 %v250
    %340 = vmatpush.msra.mxu0 %v249
    %341 = vmatmul.f32.gmra.mxu0 %v82
    %v342 = vpop.f32.mrf.mxu0
    %v343 = vadd.f32 0.0, %v342
    %344 = vdwg.mxu0
    %345 = vmatpush.msra.mxu0 0.0
    %346 = vmatpush.msra.mxu0 0.0
    %347 = vmatpush.msra.mxu0 0.0
    %348 = vmatpush.msra.mxu0 0.0
    %349 = vmatpush.msra.mxu0 0.0
    %350 = vmatpush.msra.mxu0 0.0
    %351 = vmatpush.msra.mxu0 0.0
    %352 = vmatpush.msra.mxu0 0.0
    %353 = vmatpush.msra.mxu0 0.0
    %354 = vmatpush.msra.mxu0 0.0
    %355 = vmatpush.msra.mxu0 0.0
    %356 = vmatpush.msra.mxu0 0.0
    %357 = vmatpush.msra.mxu0 %v240
    %358 = vmatpush.msra.mxu0 %v239
    %359 = vmatpush.msra.mxu0 %v238
    %360 = vmatpush.msra.mxu0 %v237
    %361 = vmatmul.f32.gmra.mxu0 %v283
    %v362 = vpop.f32.mrf.mxu0
    %v363 = vadd.f32 %v343, %v362
    %364 = vdwg.mxu0
    %v365 = vadd.f32 %v363, %v258
    %v366 = vxor.u32 %v365, 2147483648
    %v367 = vmul.f32 %v366, 1.442695
    %v368 = vpow.pop %v367
    %v369 = vadd.f32 %v368, 1.0
    %v370 = vrcp.pop %v369
    %v371 = vmul.f32 %v369, %v370
    %v372 = vsub.f32 1.0, %v371
    %v373 = vmul.f32 %v370, %v372
    %v374 = vadd.f32 %v370, %v373
    %vm375 = vweird.f32 %v369
    %vm376 = vweird.f32 %v370
    %vm377 = vmor %vm375, %vm376
    %v378 = vsel %vm377, %v370, %v374
    %v379 = vand.u32 2147483647, %v369
    %vm380 = vcmp.eq.f32.partialorder %v379, 8.507059e+37
    %v381 = vand.u32 %v369, 2147483648
    %v382 = vor.u32 1.1754944e-38, %v381
    %v383 = vsel %vm380, %v382, %v378
    %v384 = vmul.f32 1.0, %v383
    %385 = vmatpush.msra.mxu0 0.0
    %386 = vmatpush.msra.mxu0 0.0
    %387 = vmatpush.msra.mxu0 0.0
    %388 = vmatpush.msra.mxu0 0.0
    %389 = vmatpush.msra.mxu0 0.0
    %390 = vmatpush.msra.mxu0 0.0
    %391 = vmatpush.msra.mxu0 0.0
    %392 = vmatpush.msra.mxu0 0.0
    %393 = vmatpush.msra.mxu0 0.0
    %394 = vmatpush.msra.mxu0 0.0
    %395 = vmatpush.msra.mxu0 0.0
    %396 = vmatpush.msra.mxu0 0.0
    %397 = vmatpush.msra.mxu0 %v256
    %398 = vmatpush.msra.mxu0 %v255
    %399 = vmatpush.msra.mxu0 %v254
    %400 = vmatpush.msra.mxu0 %v253
    %401 = vmatmul.f32.gmra.mxu0 %v82
    %v402 = vpop.f32.mrf.mxu0
    %v403 = vadd.f32 %v260, %v402
    %404 = vdwg.mxu0
    %405 = vmatpush.msra.mxu0 0.0
    %406 = vmatpush.msra.mxu0 0.0
    %407 = vmatpush.msra.mxu0 0.0
    %408 = vmatpush.msra.mxu0 0.0
    %409 = vmatpush.msra.mxu0 0.0
    %410 = vmatpush.msra.mxu0 0.0
    %411 = vmatpush.msra.mxu0 0.0
    %412 = vmatpush.msra.mxu0 0.0
    %413 = vmatpush.msra.mxu0 0.0
    %414 = vmatpush.msra.mxu0 0.0
    %415 = vmatpush.msra.mxu0 0.0
    %416 = vmatpush.msra.mxu0 0.0
    %417 = vmatpush.msra.mxu0 %v244
    %418 = vmatpush.msra.mxu0 %v243
    %419 = vmatpush.msra.mxu0 %v242
    %420 = vmatpush.msra.mxu0 %v241
    %421 = vmatmul.f32.gmra.mxu0 %v283
    %v422 = vpop.f32.mrf.mxu0
    %v423 = vadd.f32 %v259, %v422
    %424 = vdwg.mxu0
    %v425 = vmul.f32 %v324, %v403
    %v426 = vadd.f32 %v423, %v425
    %v427 = vtanh.pop %v426
    %v428 = vsub.f32 1.0, %v384
    %v429 = vmul.f32 %v428, %v427
    %v430 = vmul.f32 %v384, %v71
    %v431 = vadd.f32 %v429, %v430
    %v432 = vmax.f32 %v431, 0.0
    %v434 = vsel %vm80, %v431, 0
    %436 = vmatpush.msra.mxu0 0.0
    %437 = vmatpush.msra.mxu0 0.0
    %438 = vmatpush.msra.mxu0 0.0
    %439 = vmatpush.msra.mxu0 0.0
    %440 = vmatpush.msra.mxu0 0.0
    %441 = vmatpush.msra.mxu0 0.0
    %442 = vmatpush.msra.mxu0 0.0
    %443 = vmatpush.msra.mxu0 0.0
    %444 = vmatpush.msra.mxu0 0.0
    %445 = vmatpush.msra.mxu0 0.0
    %446 = vmatpush.msra.mxu0 0.0
    %447 = vmatpush.msra.mxu0 0.0
    %448 = vmatpush.msra.mxu0 %v248
    %449 = vmatpush.msra.mxu0 %v247
    %450 = vmatpush.msra.mxu0 %v246
    %451 = vmatpush.msra.mxu0 %v245
    %452 = vmatmul.f32.gmra.mxu0 %v434
    %v453 = vpop.f32.mrf.mxu0
    %v454 = vadd.f32 0.0, %v453
    %455 = vdwg.mxu0
    %v457 = vsel %vm80, %v432, 0
    %459 = vmatpush.msra.mxu0 0.0
    %460 = vmatpush.msra.mxu0 0.0
    %461 = vmatpush.msra.mxu0 0.0
    %462 = vmatpush.msra.mxu0 0.0
    %463 = vmatpush.msra.mxu0 0.0
    %464 = vmatpush.msra.mxu0 0.0
    %465 = vmatpush.msra.mxu0 0.0
    %466 = vmatpush.msra.mxu0 0.0
    %467 = vmatpush.msra.mxu0 0.0
    %468 = vmatpush.msra.mxu0 0.0
    %469 = vmatpush.msra.mxu0 0.0
    %470 = vmatpush.msra.mxu0 0.0
    %471 = vmatpush.msra.mxu0 %v236
    %472 = vmatpush.msra.mxu0 %v235
    %473 = vmatpush.msra.mxu0 %v234
    %474 = vmatpush.msra.mxu0 %v233
    %475 = vmatmul.f32.gmra.mxu0 %v457
    %v476 = vpop.f32.mrf.mxu0
    %v477 = vadd.f32 %v454, %v476
    %478 = vdwg.mxu0
    %v479 = vadd.f32 %v477, %v257
    %v480 = vxor.u32 %v479, 2147483648
    %v481 = vmul.f32 %v480, 1.442695
    %v482 = vpow.pop %v481
    %v483 = vadd.f32 %v482, 1.0
    %v484 = vrcp.pop %v483
    %v485 = vmul.f32 %v483, %v484
    %v486 = vsub.f32 1.0, %v485
    %v487 = vmul.f32 %v484, %v486
    %v488 = vadd.f32 %v484, %v487
    %vm489 = vweird.f32 %v483
    %vm490 = vweird.f32 %v484
    %vm491 = vmor %vm489, %vm490
    %v492 = vsel %vm491, %v484, %v488
    %v493 = vand.u32 2147483647, %v483
    %vm494 = vcmp.eq.f32.partialorder %v493, 8.507059e+37
    %v495 = vand.u32 %v483, 2147483648
    %v496 = vor.u32 1.1754944e-38, %v495
    %v497 = vsel %vm494, %v496, %v492
    %v498 = vmul.f32 1.0, %v497
    %499 = vmatpush.msra.mxu0 0.0
    %500 = vmatpush.msra.mxu0 0.0
    %501 = vmatpush.msra.mxu0 0.0
    %502 = vmatpush.msra.mxu0 0.0
    %503 = vmatpush.msra.mxu0 0.0
    %504 = vmatpush.msra.mxu0 0.0
    %505 = vmatpush.msra.mxu0 0.0
    %506 = vmatpush.msra.mxu0 0.0
    %507 = vmatpush.msra.mxu0 0.0
    %508 = vmatpush.msra.mxu0 0.0
    %509 = vmatpush.msra.mxu0 0.0
    %510 = vmatpush.msra.mxu0 0.0
    %511 = vmatpush.msra.mxu0 %v252
    %512 = vmatpush.msra.mxu0 %v251
    %513 = vmatpush.msra.mxu0 %v250
    %514 = vmatpush.msra.mxu0 %v249
    %515 = vmatmul.f32.gmra.mxu0 %v434
    %v516 = vpop.f32.mrf.mxu0
    %v517 = vadd.f32 0.0, %v516
    %518 = vdwg.mxu0
    %519 = vmatpush.msra.mxu0 0.0
    %520 = vmatpush.msra.mxu0 0.0
    %521 = vmatpush.msra.mxu0 0.0
    %522 = vmatpush.msra.mxu0 0.0
    %523 = vmatpush.msra.mxu0 0.0
    %524 = vmatpush.msra.mxu0 0.0
    %525 = vmatpush.msra.mxu0 0.0
    %526 = vmatpush.msra.mxu0 0.0
    %527 = vmatpush.msra.mxu0 0.0
    %528 = vmatpush.msra.mxu0 0.0
    %529 = vmatpush.msra.mxu0 0.0
    %530 = vmatpush.msra.mxu0 0.0
    %531 = vmatpush.msra.mxu0 %v240
    %532 = vmatpush.msra.mxu0 %v239
    %533 = vmatpush.msra.mxu0 %v238
    %534 = vmatpush.msra.mxu0 %v237
    %535 = vmatmul.f32.gmra.mxu0 %v457
    %v536 = vpop.f32.mrf.mxu0
    %v537 = vadd.f32 %v517, %v536
    %538 = vdwg.mxu0
    %v539 = vadd.f32 %v537, %v258
    %v540 = vxor.u32 %v539, 2147483648
    %v541 = vmul.f32 %v540, 1.442695
    %v542 = vpow.pop %v541
    %v543 = vadd.f32 %v542, 1.0
    %v544 = vrcp.pop %v543
    %v545 = vmul.f32 %v543, %v544
    %v546 = vsub.f32 1.0, %v545
    %v547 = vmul.f32 %v544, %v546
    %v548 = vadd.f32 %v544, %v547
    %vm549 = vweird.f32 %v543
    %vm550 = vweird.f32 %v544
    %vm551 = vmor %vm549, %vm550
    %v552 = vsel %vm551, %v544, %v548
    %v553 = vand.u32 2147483647, %v543
    %vm554 = vcmp.eq.f32.partialorder %v553, 8.507059e+37
    %v555 = vand.u32 %v543, 2147483648
    %v556 = vor.u32 1.1754944e-38, %v555
    %v557 = vsel %vm554, %v556, %v552
    %v558 = vmul.f32 1.0, %v557
    %559 = vmatpush.msra.mxu0 0.0
    %560 = vmatpush.msra.mxu0 0.0
    %561 = vmatpush.msra.mxu0 0.0
    %562 = vmatpush.msra.mxu0 0.0
    %563 = vmatpush.msra.mxu0 0.0
    %564 = vmatpush.msra.mxu0 0.0
    %565 = vmatpush.msra.mxu0 0.0
    %566 = vmatpush.msra.mxu0 0.0
    %567 = vmatpush.msra.mxu0 0.0
    %568 = vmatpush.msra.mxu0 0.0
    %569 = vmatpush.msra.mxu0 0.0
    %570 = vmatpush.msra.mxu0 0.0
    %571 = vmatpush.msra.mxu0 %v256
    %572 = vmatpush.msra.mxu0 %v255
    %573 = vmatpush.msra.mxu0 %v254
    %574 = vmatpush.msra.mxu0 %v253
    %575 = vmatmul.f32.gmra.mxu0 %v434
    %v576 = vpop.f32.mrf.mxu0
    %v577 = vadd.f32 %v260, %v576
    %578 = vdwg.mxu0
    %579 = vmatpush.msra.mxu0 0.0
    %580 = vmatpush.msra.mxu0 0.0
    %581 = vmatpush.msra.mxu0 0.0
    %582 = vmatpush.msra.mxu0 0.0
    %583 = vmatpush.msra.mxu0 0.0
    %584 = vmatpush.msra.mxu0 0.0
    %585 = vmatpush.msra.mxu0 0.0
    %586 = vmatpush.msra.mxu0 0.0
    %587 = vmatpush.msra.mxu0 0.0
    %588 = vmatpush.msra.mxu0 0.0
    %589 = vmatpush.msra.mxu0 0.0
    %590 = vmatpush.msra.mxu0 0.0
    %591 = vmatpush.msra.mxu0 %v244
    %592 = vmatpush.msra.mxu0 %v243
    %593 = vmatpush.msra.mxu0 %v242
    %594 = vmatpush.msra.mxu0 %v241
    %595 = vmatmul.f32.gmra.mxu0 %v457
    %v596 = vpop.f32.mrf.mxu0
    %v597 = vadd.f32 %v259, %v596
    %598 = vdwg.mxu0
    %v599 = vmul.f32 %v498, %v577
    %v600 = vadd.f32 %v597, %v599
    %v601 = vtanh.pop %v600
    %v602 = vsub.f32 1.0, %v558
    %v603 = vmul.f32 %v602, %v601
    %v604 = vmul.f32 %v558, %v431
    %v605 = vadd.f32 %v603, %v604
    %v606 = vld [vmem:[%s15] sm:$0xff]
    %v607 = vld [vmem:[%s15 + $0x8] sm:$0xff]
    %v608 = vld [vmem:[%s15 + $0x10] sm:$0xff]
    %v609 = vld [vmem:[%s15 + $0x18] sm:$0xff]
    %v610 = vld [vmem:[%s16] sm:$0x1]
    %v612 = vsel %vm80, %v605, 0
    %614 = vmatpush.msra.mxu0 0.0
    %615 = vmatpush.msra.mxu0 0.0
    %616 = vmatpush.msra.mxu0 0.0
    %617 = vmatpush.msra.mxu0 0.0
    %618 = vmatpush.msra.mxu0 0.0
    %619 = vmatpush.msra.mxu0 0.0
    %620 = vmatpush.msra.mxu0 0.0
    %621 = vmatpush.msra.mxu0 0.0
    %622 = vmatpush.msra.mxu0 0.0
    %623 = vmatpush.msra.mxu0 0.0
    %624 = vmatpush.msra.mxu0 0.0
    %625 = vmatpush.msra.mxu0 0.0
    %626 = vmatpush.msra.mxu0 %v609
    %627 = vmatpush.msra.mxu0 %v608
    %628 = vmatpush.msra.mxu0 %v607
    %629 = vmatpush.msra.mxu0 %v606
    %630 = vmatmul.f32.gmra.mxu0 %v612
    %v631 = vpop.f32.mrf.mxu0
    %v632 = vadd.f32 %v610, %v631
    %633 = vdwg.mxu0
    %v634 = vsel %vm129, %v632, -inf
    %635 = vmax.xlane.f32.xlu0 %v634
    %v636 = vpop.xlane.xlu0 %635
    %v637 = vsub.f32 %v632, %v636
    %v638 = vmul.f32 %v637, 1.442695
    %v639 = vpow.pop %v638
    %v640 = vsel %vm129, %v639, 0.0
    %641 = vadd.xlane.f32.xlu0 %v640
    %v642 = vpop.xlane.xlu0 %641
    %v643 = vlog2.pop %v642
    %v644 = vmul.f32 %v643, 0.6931472
    %v645 = vadd.f32 %v644, %v636
    %v646 = vsub.f32 %v632, %v645
    %647 = vst [vmem:[#allocation4] sm:$0xff] 0.0
    %648 = vst [vmem:[#allocation4] sm:$0x1] %v646
    %649 = vst [vmem:[#allocation4 + $0x1] sm:$0x1] %v153
    %vm650 = vcmask 253952
    %651 = vst.msk [vmem:[#allocation4 + $0x2] sm:$0x1] %vm650, %v605
    // Predicated region
    $region66: #{tpu_custom_call.1} parent=1 // pred_check
      _
    $region67: #{tpu_custom_call.1} parent=1 // pred_check_branch
      %653 = sbr.rel (0) target = $region69
    $region68: #{tpu_custom_call.1} parent=1 // pred_region
      %655 = vsyncadd [#allocation5], 0
      %s657 = sshll.u32 [#allocation4], 4
      %s658 = int_to_ptr.vmem [resolvable:$true] %s657
      %s659 = sshll.u32 %s17, 4
      %s660 = int_to_ptr.hbm [resolvable:$true] %s659
      %662 = dma.vmem_to_hbm [thread:$0]  %s658, 128, %s660, [#allocation5]
    $region69: #{tpu_custom_call.1} parent=1 // pred_fallthru
      _
    // Predicated region
    $region70: #{tpu_custom_call.1} parent=1 // pred_check
      _
    $region71: #{tpu_custom_call.1} parent=1 // pred_check_branch
      %664 = sbr.rel (0) target = $region73
    $region72: #{tpu_custom_call.1} parent=1 // pred_region
      %666 = dma.done [#allocation5], 128
    $region73: #{tpu_custom_call.1} parent=1 // pred_fallthru
      _
    %667 = vsyncpa [#allocation5], 1

</llo_original>
